<compile_context>
chip_gen: v6e
topology: v6e:2x2x1
jax: 0.10.0
libtpu: 0.0.40
codegen_flags: <defaults>
</compile_context>

<pallas_src>
import jax
import jax.numpy as jnp
from jax.experimental import pallas as pl
from jax.experimental.pallas import tpu as pltpu


def _copy_kernel(x_ref, o_ref):
    # Pure pass-through: load the whole VMEM tile and store it back out.
    o_ref[...] = x_ref[...]


def _pick_lane_width(total_elems: int):
    """Choose a lane-dense last dim (multiple of 128, prefer >=512)."""
    for lane in (512, 1024, 2048, 256, 128):
        if total_elems % lane == 0:
            return lane, 0
    lane = 512
    pad = (-total_elems) % lane
    return lane, pad


def _identity_pallas_2d(x2d: jax.Array) -> jax.Array:
    """Identity copy over a 2-D (rows, lane) array, tiled over rows."""
    rows, lane = x2d.shape
    itemsize = jnp.dtype(x2d.dtype).itemsize

    # Sublane packing: f32 -> 8-row align, bf16 -> 16, int8/fp8 -> 32.
    row_align = 8 * max(1, 4 // itemsize)

    # Size the block by bytes (~2 MiB). Double-buffered in + out => ~8 MiB of
    # pipelined VMEM — portable across v5e/v6e/v7x scoped-VMEM defaults.
    target_block_bytes = 2 * 1024 * 1024
    tile_rows = (target_block_bytes // (lane * itemsize)) // row_align * row_align
    tile_rows = max(row_align, tile_rows)
    if tile_rows >= rows:
        tile_rows = rows  # full-extent block along rows is always legal

    grid = (pl.cdiv(rows, tile_rows),)

    cost = pl.CostEstimate(
        flops=0,
        transcendentals=0,
        bytes_accessed=2 * rows * lane * itemsize,
    )

    return pl.pallas_call(
        _copy_kernel,
        out_shape=jax.ShapeDtypeStruct((rows, lane), x2d.dtype),
        grid=grid,
        in_specs=[pl.BlockSpec((tile_rows, lane), lambda i: (i, 0))],
        out_specs=pl.BlockSpec((tile_rows, lane), lambda i: (i, 0)),
        input_output_aliases={0: 0},
        cost_estimate=cost,
        compiler_params=pltpu.CompilerParams(
            dimension_semantics=("parallel",),
        ),
    )(x2d)


@jax.jit
def _identity_passthrough(x: jax.Array) -> jax.Array:
    """Flatten to a lane-dense 2-D slab, run the Pallas copy, restore shape."""
    orig_shape = x.shape
    total = x.size
    lane, pad = _pick_lane_width(total)

    flat = x.reshape(-1)
    if pad:
        flat = jnp.pad(flat, (0, pad))
    x2d = flat.reshape((total + pad) // lane, lane)

    y2d = _identity_pallas_2d(x2d)

    y = y2d.reshape(-1)
    if pad:
        y = y[:total]
    return y.reshape(orig_shape)


class LossPallas:
    """JAX/Pallas mirror of the (empty) PyTorch `Loss` module.

    `forward(...)` reproduces the reference behaviour exactly (raises
    NotImplementedError). `placeholder_identity(x)` exercises the TPU path
    end-to-end with a lane-dense identity Pallas kernel.
    """

    def __init__(self):
        # Reference __init__ defines no parameters; nothing to initialize.
        pass

    def forward(self, *args, **kwargs):
        # Exact semantics of the PyTorch module.
        raise NotImplementedError

    def __call__(self, *args, **kwargs):
        return self.forward(*args, **kwargs)

    def placeholder_identity(self, x_nchw: jax.Array) -> jax.Array:
        return _identity_passthrough(x_nchw)


if __name__ == "__main__":
    key = jax.random.PRNGKey(0)
    x = jax.random.normal(key, (2, 4, 16, 16), dtype=jnp.float32)  # NCHW

    module = LossPallas()

    # Confirm faithful forward() semantics (must raise, like the reference).
    try:
        module.forward(x)
        raise AssertionError("forward() was expected to raise NotImplementedError")
    except NotImplementedError:
        pass

    # Exercise the placeholder identity Pallas kernel on TPU.
    y = module.placeholder_identity(x)
    jax.block_until_ready(y)
    assert y.shape == x.shape and y.dtype == x.dtype
    assert bool(jnp.allclose(y, x))
    print("KERNEL_OK")
</pallas_src>

<mosaic_0001>
module attributes {stable_mosaic.version = 11 : i64} {
  func.func @_copy_kernel(%arg0: i32, %arg1: memref<4x512xf32, #tpu.memory_space<vmem>>, %arg2: memref<4x512xf32, #tpu.memory_space<vmem>>) attributes {dimension_semantics = [#tpu.dimension_semantics<parallel>], iteration_bounds = array<i64: 1>, scalar_prefetch = 0 : i64, scratch_operands = 0 : i64, tpu.core_type = #tpu.core_type<tc>, window_params = [{transform_indices = @transform_0, window_bounds = array<i64: 4, 512>}, {transform_indices = @transform_1, window_bounds = array<i64: 4, 512>}]} {
    %c0 = arith.constant 0 : index
    %c0_0 = arith.constant 0 : index
    %0 = vector.load %arg1[%c0, %c0_0] : memref<4x512xf32, #tpu.memory_space<vmem>>, vector<4x512xf32>
    %c0_1 = arith.constant 0 : index
    %c0_2 = arith.constant 0 : index
    %1 = vector.load %arg2[%c0_1, %c0_2] : memref<4x512xf32, #tpu.memory_space<vmem>>, vector<4x512xf32>
    tpu.vector_store %arg2[%c0_1, %c0_2], %0 {strides = array<i32>} : memref<4x512xf32, #tpu.memory_space<vmem>>, vector<4x512xf32>,
    return
  }
  func.func @transform_0(%arg0: i32) -> (i32, i32) {
    %c0_i32 = arith.constant 0 : i32
    %c0_i32_0 = arith.constant 0 : i32
    return %arg0, %c0_i32 : i32, i32
  }
  func.func @transform_1(%arg0: i32) -> (i32, i32) {
    %c0_i32 = arith.constant 0 : i32
    %c0_i32_0 = arith.constant 0 : i32
    return %arg0, %c0_i32 : i32, i32
  }
}

</mosaic_0001>

<llo_original>
// kernel: _identity_passthrough.1
$region0: #{_identity_passthrough.1}
  #allocation0 [shape = 'u32[]', space=smem, size = 0x4, offset = 0x4, fixed_abs, tag = 'smem constant byte address 0x4 - core index']
  #allocation1 [shape = 'u32[144,128]{1,0:T(1,128)}', space=vmem, size = 0x12000, scoped, tag = 'internal scratch']
  %s0 = inlined_call_operand.vmem [shape: f32[4,512], index: 0, kind: input, shape index: {}, may-alias: {0,1}]
  %s1 = inlined_call_operand.vmem [shape: f32[4,512], index: 1, kind: output, shape index: {}, may-alias: {0,1}]
  %s2 = sld [smem:[#allocation0]]
  $region14: #{_identity_passthrough.1} parent=0
    _
  %s4 = ssub.s32 1, %s2
  %s5 = scalar_select 0, %s4, %s2
  // Predicated region
  $region2: #{_identity_passthrough.1} parent=0 // pred_check
    _
  $region3: #{_identity_passthrough.1} parent=0 // pred_check_branch
    %7 = sbr.rel (0) target = $region5
  $region4: #{_identity_passthrough.1} parent=0 // pred_region
    _
  $region5: #{_identity_passthrough.1} parent=0 // pred_fallthru
    _
  %v8 = vld [vmem:[%s0] sm:$0xff]
  %v9 = vld [vmem:[%s0 + $0x8] sm:$0xff]
  %10 = vst [vmem:[%s1] sm:$0xff] %v8
  %11 = vst [vmem:[%s1 + $0x8] sm:$0xff] %v9
  // Predicated region
  $region6: #{_identity_passthrough.1} parent=0 // pred_check
    _
  $region7: #{_identity_passthrough.1} parent=0 // pred_check_branch
    %13 = sbr.rel (0) target = $region9
  $region8: #{_identity_passthrough.1} parent=0 // pred_region
    _
  $region9: #{_identity_passthrough.1} parent=0 // pred_fallthru
    _
  // Predicated region
  $region10: #{_identity_passthrough.1} parent=0 // pred_check
    _
  $region11: #{_identity_passthrough.1} parent=0 // pred_check_branch
    %15 = sbr.rel (0) target = $region13
  $region12: #{_identity_passthrough.1} parent=0 // pred_region
    _
  $region13: #{_identity_passthrough.1} parent=0 // pred_fallthru
    _

</llo_original>
